<compile_context>
chip_gen: v7x
topology: tpu7x:2x2x1
jax: 0.10.0
libtpu: 0.0.40
codegen_flags: <defaults>
</compile_context>

<pallas_src>
import functools

import jax
import jax.numpy as jnp
from jax.experimental import pallas as pl
from jax.experimental.pallas import tpu as pltpu

_IN = 784
_HIDDEN = 256
_OUT_PAD = 128  # final (256, 1) layer zero-padded to 128 lanes for the MXU


def _round_up(x, m):
    return ((x + m - 1) // m) * m


def _leaky_relu(x, slope=0.2):
    return jnp.where(x >= 0, x, slope * x)


def discriminator_kernel(x_ref, w1_ref, b1_ref, w2_ref, b2_ref, w3_ref, b3_ref,
                         o_ref):
    # Fused MLP for one batch tile: 3 MXU matmuls + VPU activations + EUP exp.
    # x arrives in its HBM dtype; cast to the matmul dtype in VMEM (free VPU op,
    # avoids a separate XLA cast pass over x in HBM).
    x = x_ref[...].astype(w1_ref.dtype)                              # (TB, 784)

    h1 = jnp.dot(x, w1_ref[...], preferred_element_type=jnp.float32)
    h1 = _leaky_relu(h1 + b1_ref[...])                               # (TB, 256) f32

    h2 = jnp.dot(h1.astype(w2_ref.dtype), w2_ref[...],
                 preferred_element_type=jnp.float32)
    h2 = _leaky_relu(h2 + b2_ref[...])                               # (TB, 256) f32

    h3 = jnp.dot(h2.astype(w3_ref.dtype), w3_ref[...],
                 preferred_element_type=jnp.float32) + b3_ref[...]   # (TB, 128) f32

    # Only lane 0 is the real logit (w3/b3 pad columns are zero).  Slice it and
    # write a tiny (TB, 1) block: 4 B/row of HBM instead of 512 B/row.
    logit = h3[:, 0:1]                                               # (TB, 1) f32
    o_ref[...] = (1.0 / (1.0 + jnp.exp(-logit))).astype(o_ref.dtype)


@functools.partial(jax.jit, static_argnames=("block_batch", "compute_dtype"))
def discriminator_forward(x, params, *, block_batch=1024,
                          compute_dtype=jnp.bfloat16):
    """x: (B, 784) float. params: dict of W1,b1,W2,b2,W3,b3 (f32, (in,out) layout).

    Returns (B, 1) float32 probabilities.
    bf16 compute (default) keeps f32 accumulation; expect ~1e-2 level error vs f32.
    """
    B, D_in = x.shape
    assert D_in == _IN, D_in

    # Weights in the MXU-native compute dtype; biases stay f32.
    w1 = params["w1"].astype(compute_dtype)
    w2 = params["w2"].astype(compute_dtype)
    w3p = (jnp.zeros((_HIDDEN, _OUT_PAD), jnp.float32)
           .at[:, :1].set(params["w3"])).astype(compute_dtype)
    b1 = params["b1"].astype(jnp.float32)
    b2 = params["b2"].astype(jnp.float32)
    b3p = jnp.zeros((1, _OUT_PAD), jnp.float32).at[:, :1].set(params["b3"])

    # Batch tile: multiple of 8 (sublane rule).  No jnp.pad of x — the last grid
    # step reads a partially out-of-bounds block (row-local unspecified values)
    # and its out-of-bounds output rows are dropped by Pallas on store.
    TB = min(block_batch, _round_up(B, 8))
    grid_b = pl.cdiv(B, TB)

    def const_spec(shape):
        # Constant index_map: block is DMA'd once and stays resident in VMEM.
        return pl.BlockSpec(shape, lambda i: (0, 0))

    x_bytes = x.dtype.itemsize
    w_bytes = jnp.dtype(compute_dtype).itemsize
    n_w = _IN * _HIDDEN + _HIDDEN * _HIDDEN + _HIDDEN * _OUT_PAD
    cost = pl.CostEstimate(
        flops=2 * B * n_w,
        transcendentals=B,
        bytes_accessed=(B * _IN * x_bytes            # x (dominant stream)
                        + n_w * w_bytes              # weights (once)
                        + (2 * _HIDDEN + _OUT_PAD) * 4   # biases
                        + B * 4),                    # output (4 B/row)
    )

    return pl.pallas_call(
        discriminator_kernel,
        out_shape=jax.ShapeDtypeStruct((B, 1), jnp.float32),
        grid=(grid_b,),
        in_specs=[
            pl.BlockSpec((TB, _IN), lambda i: (i, 0)),       # x: tiled over batch
            const_spec((_IN, _HIDDEN)), const_spec((1, _HIDDEN)),
            const_spec((_HIDDEN, _HIDDEN)), const_spec((1, _HIDDEN)),
            const_spec((_HIDDEN, _OUT_PAD)), const_spec((1, _OUT_PAD)),
        ],
        out_specs=pl.BlockSpec((TB, 1), lambda i: (i, 0)),
        compiler_params=pltpu.CompilerParams(
            # "parallel" lets the batch axis split across v7x's 2 TCs; switch to
            # pltpu.CORE_PARALLEL there if xprof shows one core idle.
            dimension_semantics=("parallel",),
            # Covers double-buffered f32 x blocks at TB=1024 on v5e's 16 MiB
            # scoped default; raise this if block_batch is pushed past ~2048.
            vmem_limit_bytes=32 * 1024 * 1024,
        ),
        cost_estimate=cost,
    )(x, w1, b1, w2, b2, w3p, b3p)


def init_params(key):
    """Deterministic synthetic init matching nn.Linear shapes.

    PyTorch stores Linear weight as (out, in); we store the transpose (in, out)
    so the kernel computes x @ W + b.
    """
    ks = jax.random.split(key, 6)

    def linear(kw, kb, fan_in, fan_out):
        bound = 1.0 / jnp.sqrt(fan_in)
        w = jax.random.uniform(kw, (fan_in, fan_out), jnp.float32, -bound, bound)
        b = jax.random.uniform(kb, (1, fan_out), jnp.float32, -bound, bound)
        return w, b

    w1, b1 = linear(ks[0], ks[1], _IN, _HIDDEN)
    w2, b2 = linear(ks[2], ks[3], _HIDDEN, _HIDDEN)
    w3, b3 = linear(ks[4], ks[5], _HIDDEN, 1)
    return {"w1": w1, "b1": b1, "w2": w2, "b2": b2, "w3": w3, "b3": b3}


def reference_forward(x, p):
    h = x @ p["w1"] + p["b1"]
    h = jnp.where(h >= 0, h, 0.2 * h)
    h = h @ p["w2"] + p["b2"]
    h = jnp.where(h >= 0, h, 0.2 * h)
    h = h @ p["w3"] + p["b3"]
    return jax.nn.sigmoid(h)


if __name__ == "__main__":
    key = jax.random.PRNGKey(0)
    k_param, k_x, k_x2 = jax.random.split(key, 3)

    params = init_params(k_param)

    # Case 1: small batch, f32 compute path, tight tolerance.
    B = 8
    x = jax.random.normal(k_x, (B, 784), jnp.float32)
    out = jax.block_until_ready(
        discriminator_forward(x, params, compute_dtype=jnp.float32))
    ref = reference_forward(x, params)
    assert out.shape == (B, 1), out.shape
    assert jnp.allclose(out, ref, atol=1e-5, rtol=1e-5), (
        f"f32 max err {jnp.max(jnp.abs(out - ref))}")

    # Case 2: ragged batch exercising the multi-tile grid + OOB last tile, with
    # the default bf16 compute path (looser tolerance per bf16 precision).
    B2 = 300
    x2 = jax.random.normal(k_x2, (B2, 784), jnp.float32)
    out2 = jax.block_until_ready(
        discriminator_forward(x2, params, block_batch=128))
    ref2 = reference_forward(x2, params)
    assert out2.shape == (B2, 1), out2.shape
    assert jnp.allclose(out2, ref2, atol=2e-2, rtol=2e-2), (
        f"bf16 max err {jnp.max(jnp.abs(out2 - ref2))}")

    print("KERNEL_OK")
</pallas_src>

<mosaic_0001>
module attributes {stable_mosaic.version = 11 : i64} {
  func.func @discriminator_kernel(%arg0: i32, %arg1: memref<8x784xf32, #tpu.memory_space<vmem>>, %arg2: memref<784x256xf32, #tpu.memory_space<vmem>>, %arg3: memref<1x256xf32, #tpu.memory_space<vmem>>, %arg4: memref<256x256xf32, #tpu.memory_space<vmem>>, %arg5: memref<1x256xf32, #tpu.memory_space<vmem>>, %arg6: memref<256x128xf32, #tpu.memory_space<vmem>>, %arg7: memref<1x128xf32, #tpu.memory_space<vmem>>, %arg8: memref<8x1xf32, #tpu.memory_space<vmem>>) attributes {dimension_semantics = [#tpu.dimension_semantics<parallel>], iteration_bounds = array<i64: 1>, scalar_prefetch = 0 : i64, scratch_operands = 0 : i64, tpu.core_type = #tpu.core_type<tc>, window_params = [{transform_indices = @transform_0, window_bounds = array<i64: 8, 784>}, {pipeline_mode = #tpu.pipeline_mode<synchronous>, transform_indices = @transform_1, window_bounds = array<i64: 784, 256>}, {pipeline_mode = #tpu.pipeline_mode<synchronous>, transform_indices = @transform_2, window_bounds = array<i64: 1, 256>}, {pipeline_mode = #tpu.pipeline_mode<synchronous>, transform_indices = @transform_3, window_bounds = array<i64: 256, 256>}, {pipeline_mode = #tpu.pipeline_mode<synchronous>, transform_indices = @transform_4, window_bounds = array<i64: 1, 256>}, {pipeline_mode = #tpu.pipeline_mode<synchronous>, transform_indices = @transform_5, window_bounds = array<i64: 256, 128>}, {pipeline_mode = #tpu.pipeline_mode<synchronous>, transform_indices = @transform_6, window_bounds = array<i64: 1, 128>}, {transform_indices = @transform_7, window_bounds = array<i64: 8, 1>}]} {
    %c0 = arith.constant 0 : index
    %c0_0 = arith.constant 0 : index
    %0 = vector.load %arg1[%c0, %c0_0] : memref<8x784xf32, #tpu.memory_space<vmem>>, vector<8x784xf32>
    %c0_1 = arith.constant 0 : index
    %c0_2 = arith.constant 0 : index
    %1 = vector.load %arg2[%c0_1, %c0_2] : memref<784x256xf32, #tpu.memory_space<vmem>>, vector<784x256xf32>
    %cst = arith.constant dense<0.000000e+00> : vector<8x256xf32>
    %2 = tpu.matmul %0, %1, %cst {dimension_numbers = #tpu.dot_dimension_numbers<[1], [0], [0], [1], [0, 0, 1, 1], [], []>} : vector<8x784xf32>, vector<784x256xf32>, vector<8x256xf32> -> vector<8x256xf32>
    %c0_3 = arith.constant 0 : index
    %c0_4 = arith.constant 0 : index
    %3 = vector.load %arg3[%c0_3, %c0_4] : memref<1x256xf32, #tpu.memory_space<vmem>>, vector<1x256xf32>
    %4 = vector.broadcast %3 : vector<1x256xf32> to vector<8x256xf32>
    %5 = arith.addf %2, %4 : vector<8x256xf32>
    %cst_5 = arith.constant 0.000000e+00 : f32
    %6 = vector.broadcast %cst_5 : f32 to vector<8x256xf32>
    %7 = arith.cmpf oge, %5, %6 : vector<8x256xf32>
    %cst_6 = arith.constant 2.000000e-01 : f32
    %8 = vector.broadcast %cst_6 : f32 to vector<8x256xf32>
    %9 = arith.mulf %8, %5 : vector<8x256xf32>
    %10 = arith.select %7, %5, %9 : vector<8x256xi1>, vector<8x256xf32>
    %c0_7 = arith.constant 0 : index
    %c0_8 = arith.constant 0 : index
    %11 = vector.load %arg4[%c0_7, %c0_8] : memref<256x256xf32, #tpu.memory_space<vmem>>, vector<256x256xf32>
    %cst_9 = arith.constant dense<0.000000e+00> : vector<8x256xf32>
    %12 = tpu.matmul %10, %11, %cst_9 {dimension_numbers = #tpu.dot_dimension_numbers<[1], [0], [0], [1], [0, 0, 1, 1], [], []>} : vector<8x256xf32>, vector<256x256xf32>, vector<8x256xf32> -> vector<8x256xf32>
    %c0_10 = arith.constant 0 : index
    %c0_11 = arith.constant 0 : index
    %13 = vector.load %arg5[%c0_10, %c0_11] : memref<1x256xf32, #tpu.memory_space<vmem>>, vector<1x256xf32>
    %14 = vector.broadcast %13 : vector<1x256xf32> to vector<8x256xf32>
    %15 = arith.addf %12, %14 : vector<8x256xf32>
    %cst_12 = arith.constant 0.000000e+00 : f32
    %16 = vector.broadcast %cst_12 : f32 to vector<8x256xf32>
    %17 = arith.cmpf oge, %15, %16 : vector<8x256xf32>
    %cst_13 = arith.constant 2.000000e-01 : f32
    %18 = vector.broadcast %cst_13 : f32 to vector<8x256xf32>
    %19 = arith.mulf %18, %15 : vector<8x256xf32>
    %20 = arith.select %17, %15, %19 : vector<8x256xi1>, vector<8x256xf32>
    %c0_14 = arith.constant 0 : index
    %c0_15 = arith.constant 0 : index
    %21 = vector.load %arg6[%c0_14, %c0_15] : memref<256x128xf32, #tpu.memory_space<vmem>>, vector<256x128xf32>
    %cst_16 = arith.constant dense<0.000000e+00> : vector<8x128xf32>
    %22 = tpu.matmul %20, %21, %cst_16 {dimension_numbers = #tpu.dot_dimension_numbers<[1], [0], [0], [1], [0, 0, 1, 1], [], []>} : vector<8x256xf32>, vector<256x128xf32>, vector<8x128xf32> -> vector<8x128xf32>
    %c0_17 = arith.constant 0 : index
    %c0_18 = arith.constant 0 : index
    %23 = vector.load %arg7[%c0_17, %c0_18] : memref<1x128xf32, #tpu.memory_space<vmem>>, vector<1x128xf32>
    %24 = vector.broadcast %23 : vector<1x128xf32> to vector<8x128xf32>
    %25 = arith.addf %22, %24 : vector<8x128xf32>
    %26 = vector.extract_strided_slice %25 {offsets = [0, 0], sizes = [8, 1], strides = [1, 1]} : vector<8x128xf32> to vector<8x1xf32>
    %cst_19 = arith.constant 0.000000e+00 : f32
    %27 = vector.broadcast %cst_19 : f32 to vector<8x1xf32>
    %28 = arith.subf %27, %26 : vector<8x1xf32>
    %29 = math.exp %28 : vector<8x1xf32>
    %cst_20 = arith.constant 1.000000e+00 : f32
    %30 = vector.broadcast %cst_20 : f32 to vector<8x1xf32>
    %31 = arith.addf %30, %29 : vector<8x1xf32>
    %cst_21 = arith.constant 1.000000e+00 : f32
    %32 = vector.broadcast %cst_21 : f32 to vector<8x1xf32>
    %33 = arith.divf %32, %31 : vector<8x1xf32>
    %c0_22 = arith.constant 0 : index
    %c0_23 = arith.constant 0 : index
    %34 = vector.load %arg8[%c0_22, %c0_23] : memref<8x1xf32, #tpu.memory_space<vmem>>, vector<8x1xf32>
    tpu.vector_store %arg8[%c0_22, %c0_23], %33 {strides = array<i32>} : memref<8x1xf32, #tpu.memory_space<vmem>>, vector<8x1xf32>,
    return
  }
  func.func @transform_0(%arg0: i32) -> (i32, i32) {
    %c0_i32 = arith.constant 0 : i32
    %c0_i32_0 = arith.constant 0 : i32
    return %arg0, %c0_i32 : i32, i32
  }
  func.func @transform_1(%arg0: i32) -> (i32, i32) {
    %c0_i32 = arith.constant 0 : i32
    %c0_i32_0 = arith.constant 0 : i32
    %c0_i32_1 = arith.constant 0 : i32
    return %c0_i32, %c0_i32_0 : i32, i32
  }
  func.func @transform_2(%arg0: i32) -> (i32, i32) {
    %c0_i32 = arith.constant 0 : i32
    %c0_i32_0 = arith.constant 0 : i32
    %c0_i32_1 = arith.constant 0 : i32
    return %c0_i32, %c0_i32_0 : i32, i32
  }
  func.func @transform_3(%arg0: i32) -> (i32, i32) {
    %c0_i32 = arith.constant 0 : i32
    %c0_i32_0 = arith.constant 0 : i32
    %c0_i32_1 = arith.constant 0 : i32
    return %c0_i32, %c0_i32_0 : i32, i32
  }
  func.func @transform_4(%arg0: i32) -> (i32, i32) {
    %c0_i32 = arith.constant 0 : i32
    %c0_i32_0 = arith.constant 0 : i32
    %c0_i32_1 = arith.constant 0 : i32
    return %c0_i32, %c0_i32_0 : i32, i32
  }
  func.func @transform_5(%arg0: i32) -> (i32, i32) {
    %c0_i32 = arith.constant 0 : i32
    %c0_i32_0 = arith.constant 0 : i32
    %c0_i32_1 = arith.constant 0 : i32
    return %c0_i32, %c0_i32_0 : i32, i32
  }
  func.func @transform_6(%arg0: i32) -> (i32, i32) {
    %c0_i32 = arith.constant 0 : i32
    %c0_i32_0 = arith.constant 0 : i32
    %c0_i32_1 = arith.constant 0 : i32
    return %c0_i32, %c0_i32_0 : i32, i32
  }
  func.func @transform_7(%arg0: i32) -> (i32, i32) {
    %c0_i32 = arith.constant 0 : i32
    %c0_i32_0 = arith.constant 0 : i32
    return %arg0, %c0_i32 : i32, i32
  }
}

</mosaic_0001>

<llo_original>
// kernel: discriminator_forward.1
$region0: #{discriminator_forward.1}
  #allocation0 [shape = 'u32[]', space=smem, size = 0x4, offset = 0x4, fixed_abs, tag = 'smem constant byte address 0x4 - core index']
  #allocation1 [shape = 'u32[144,128]{1,0:T(1,128)}', space=vmem, size = 0x12000, scoped, tag = 'internal scratch']
  %s0 = inlined_call_operand.vmem [shape: f32[8,784], index: 0, kind: input, shape index: {}]
  %s1 = inlined_call_operand.hbm [shape: f32[784,256], index: 1, kind: input, shape index: {}]
  %s2 = inlined_call_operand.vmem [shape: f32[1,256], index: 2, kind: input, shape index: {}]
  %s3 = inlined_call_operand.vmem [shape: f32[256,256], index: 3, kind: input, shape index: {}]
  %s4 = inlined_call_operand.vmem [shape: f32[1,256], index: 4, kind: input, shape index: {}]
  %s5 = inlined_call_operand.vmem [shape: f32[256,128], index: 5, kind: input, shape index: {}]
  %s6 = inlined_call_operand.vmem [shape: f32[1,128], index: 6, kind: input, shape index: {}]
  %s7 = inlined_call_operand.vmem [shape: f32[8,1], index: 7, kind: output, shape index: {}]
  %s8 = sld [smem:[#allocation0]]
  $region42: #{discriminator_forward.1} parent=0
    _
  %s10 = ssub.s32 1, %s8
  %s11 = scalar_select 0, %s10, %s8
  $region1: #{discriminator_forward.1} parent=0
    #allocation2 [shape = 'u8[802816]{0}', space=vmem, size = 0xc4000, scoped, tag = 'input window, operand 1, single buffered']
    #allocation3 [shape = 's32[1]{0}', space=sflag, size = 0x4, scoped, tag = 'scoped memory for discriminator_forward.1']
    %12 = vsyncpa [#allocation3], 0
    // Predicated region
    $region2: #{discriminator_forward.1} parent=1 // pred_check
      _
    $region3: #{discriminator_forward.1} parent=1 // pred_check_branch
      %14 = sbr.rel (0) target = $region5
    $region4: #{discriminator_forward.1} parent=1 // pred_region
      _
    $region5: #{discriminator_forward.1} parent=1 // pred_fallthru
      _
    // Predicated region
    $region6: #{discriminator_forward.1} parent=1 // pred_check
      _
    $region7: #{discriminator_forward.1} parent=1 // pred_check_branch
      %16 = sbr.rel (0) target = $region9
    $region8: #{discriminator_forward.1} parent=1 // pred_region
      %s18 = ssub.s32 25088, 25088
      %19 = vsyncadd [#allocation3], %s18
      %s20 = sshll.u32 [#allocation2], 4
      %s21 = int_to_ptr.vmem [resolvable:$true] %s20
      %26 = dma.hbm_to_vmem [thread:$0]  %s1, 25088, %s21, [#allocation3], 256, 256, 16
    $region9: #{discriminator_forward.1} parent=1 // pred_fallthru
      _
    // Predicated region
    $region10: #{discriminator_forward.1} parent=1 // pred_check
      _
    $region11: #{discriminator_forward.1} parent=1 // pred_check_branch
      %28 = sbr.rel (0) target = $region13
    $region12: #{discriminator_forward.1} parent=1 // pred_region
      _
    $region13: #{discriminator_forward.1} parent=1 // pred_fallthru
      _
    // Predicated region
    $region14: #{discriminator_forward.1} parent=1 // pred_check
      _
    $region15: #{discriminator_forward.1} parent=1 // pred_check_branch
      %30 = sbr.rel (0) target = $region17
    $region16: #{discriminator_forward.1} parent=1 // pred_region
      _
    $region17: #{discriminator_forward.1} parent=1 // pred_fallthru
      _
    // Predicated region
    $region18: #{discriminator_forward.1} parent=1 // pred_check
      _
    $region19: #{discriminator_forward.1} parent=1 // pred_check_branch
      %32 = sbr.rel (0) target = $region21
    $region20: #{discriminator_forward.1} parent=1 // pred_region
      _
    $region21: #{discriminator_forward.1} parent=1 // pred_fallthru
      _
    // Predicated region
    $region22: #{discriminator_forward.1} parent=1 // pred_check
      _
    $region23: #{discriminator_forward.1} parent=1 // pred_check_branch
      %34 = sbr.rel (0) target = $region25
    $region24: #{discriminator_forward.1} parent=1 // pred_region
      _
    $region25: #{discriminator_forward.1} parent=1 // pred_fallthru
      _
    // Predicated region
    $region26: #{discriminator_forward.1} parent=1 // pred_check
      _
    $region27: #{discriminator_forward.1} parent=1 // pred_check_branch
      %36 = sbr.rel (0) target = $region29
    $region28: #{discriminator_forward.1} parent=1 // pred_region
      _
    $region29: #{discriminator_forward.1} parent=1 // pred_fallthru
      _
    // Predicated region
    $region30: #{discriminator_forward.1} parent=1 // pred_check
      _
    $region31: #{discriminator_forward.1} parent=1 // pred_check_branch
      %38 = sbr.rel (0) target = $region33
    $region32: #{discriminator_forward.1} parent=1 // pred_region
      %39 = dma.done [#allocation3], 25088
    $region33: #{discriminator_forward.1} parent=1 // pred_fallthru
      _
    %v40 = vld [vmem:[%s0] sm:$0xff]
    %v41 = vld [vmem:[%s0 + $0x8] sm:$0xff]
    %v42 = vld [vmem:[%s0 + $0x10] sm:$0xff]
    %v43 = vld [vmem:[%s0 + $0x18] sm:$0xff]
    %v44 = vld [vmem:[%s0 + $0x20] sm:$0xff]
    %v45 = vld [vmem:[%s0 + $0x28] sm:$0xff]
    %v46 = vld [vmem:[%s0 + $0x30] sm:$0xff]
    %v47 = vld [vmem:[#allocation2] sm:$0xff]
    %v48 = vld [vmem:[#allocation2 + $0x8] sm:$0xff]
    %v49 = vld [vmem:[#allocation2 + $0x10] sm:$0xff]
    %v50 = vld [vmem:[#allocation2 + $0x18] sm:$0xff]
    %v51 = vld [vmem:[#allocation2 + $0x20] sm:$0xff]
    %v52 = vld [vmem:[#allocation2 + $0x28] sm:$0xff]
    %v53 = vld [vmem:[#allocation2 + $0x30] sm:$0xff]
    %v54 = vld [vmem:[#allocation2 + $0x38] sm:$0xff]
    %v55 = vld [vmem:[#allocation2 + $0x40] sm:$0xff]
    %v56 = vld [vmem:[#allocation2 + $0x48] sm:$0xff]
    %v57 = vld [vmem:[#allocation2 + $0x50] sm:$0xff]
    %v58 = vld [vmem:[#allocation2 + $0x58] sm:$0xff]
    %v59 = vld [vmem:[#allocation2 + $0x60] sm:$0xff]
    %v60 = vld [vmem:[#allocation2 + $0x68] sm:$0xff]
    %v61 = vld [vmem:[#allocation2 + $0x70] sm:$0xff]
    %v62 = vld [vmem:[#allocation2 + $0x78] sm:$0xff]
    %v63 = vld [vmem:[#allocation2 + $0x80] sm:$0xff]
    %v64 = vld [vmem:[#allocation2 + $0x88] sm:$0xff]
    %v65 = vld [vmem:[#allocation2 + $0x90] sm:$0xff]
    %v66 = vld [vmem:[#allocation2 + $0x98] sm:$0xff]
    %v67 = vld [vmem:[#allocation2 + $0xa0] sm:$0xff]
    %v68 = vld [vmem:[#allocation2 + $0xa8] sm:$0xff]
    %v69 = vld [vmem:[#allocation2 + $0xb0] sm:$0xff]
    %v70 = vld [vmem:[#allocation2 + $0xb8] sm:$0xff]
    %v71 = vld [vmem:[#allocation2 + $0xc0] sm:$0xff]
    %v72 = vld [vmem:[#allocation2 + $0xc8] sm:$0xff]
    %v73 = vld [vmem:[#allocation2 + $0xd0] sm:$0xff]
    %v74 = vld [vmem:[#allocation2 + $0xd8] sm:$0xff]
    %v75 = vld [vmem:[#allocation2 + $0xe0] sm:$0xff]
    %v76 = vld [vmem:[#allocation2 + $0xe8] sm:$0xff]
    %v77 = vld [vmem:[#allocation2 + $0xf0] sm:$0xff]
    %v78 = vld [vmem:[#allocation2 + $0xf8] sm:$0xff]
    %v79 = vld [vmem:[#allocation2 + $0x100] sm:$0xff]
    %v80 = vld [vmem:[#allocation2 + $0x108] sm:$0xff]
    %v81 = vld [vmem:[#allocation2 + $0x110] sm:$0xff]
    %v82 = vld [vmem:[#allocation2 + $0x118] sm:$0xff]
    %v83 = vld [vmem:[#allocation2 + $0x120] sm:$0xff]
    %v84 = vld [vmem:[#allocation2 + $0x128] sm:$0xff]
    %v85 = vld [vmem:[#allocation2 + $0x130] sm:$0xff]
    %v86 = vld [vmem:[#allocation2 + $0x138] sm:$0xff]
    %v87 = vld [vmem:[#allocation2 + $0x140] sm:$0xff]
    %v88 = vld [vmem:[#allocation2 + $0x148] sm:$0xff]
    %v89 = vld [vmem:[#allocation2 + $0x150] sm:$0xff]
    %v90 = vld [vmem:[#allocation2 + $0x158] sm:$0xff]
    %v91 = vld [vmem:[#allocation2 + $0x160] sm:$0xff]
    %v92 = vld [vmem:[#allocation2 + $0x168] sm:$0xff]
    %v93 = vld [vmem:[#allocation2 + $0x170] sm:$0xff]
    %v94 = vld [vmem:[#allocation2 + $0x178] sm:$0xff]
    %v95 = vld [vmem:[#allocation2 + $0x180] sm:$0xff]
    %v96 = vld [vmem:[#allocation2 + $0x188] sm:$0xff]
    %v97 = vld [vmem:[#allocation2 + $0x190] sm:$0xff]
    %v98 = vld [vmem:[#allocation2 + $0x198] sm:$0xff]
    %v99 = vld [vmem:[#allocation2 + $0x1a0] sm:$0xff]
    %v100 = vld [vmem:[#allocation2 + $0x1a8] sm:$0xff]
    %v101 = vld [vmem:[#allocation2 + $0x1b0] sm:$0xff]
    %v102 = vld [vmem:[#allocation2 + $0x1b8] sm:$0xff]
    %v103 = vld [vmem:[#allocation2 + $0x1c0] sm:$0xff]
    %v104 = vld [vmem:[#allocation2 + $0x1c8] sm:$0xff]
    %v105 = vld [vmem:[#allocation2 + $0x1d0] sm:$0xff]
    %v106 = vld [vmem:[#allocation2 + $0x1d8] sm:$0xff]
    %v107 = vld [vmem:[#allocation2 + $0x1e0] sm:$0xff]
    %v108 = vld [vmem:[#allocation2 + $0x1e8] sm:$0xff]
    %v109 = vld [vmem:[#allocation2 + $0x1f0] sm:$0xff]
    %v110 = vld [vmem:[#allocation2 + $0x1f8] sm:$0xff]
    %v111 = vld [vmem:[#allocation2 + $0x200] sm:$0xff]
    %v112 = vld [vmem:[#allocation2 + $0x208] sm:$0xff]
    %v113 = vld [vmem:[#allocation2 + $0x210] sm:$0xff]
    %v114 = vld [vmem:[#allocation2 + $0x218] sm:$0xff]
    %v115 = vld [vmem:[#allocation2 + $0x220] sm:$0xff]
    %v116 = vld [vmem:[#allocation2 + $0x228] sm:$0xff]
    %v117 = vld [vmem:[#allocation2 + $0x230] sm:$0xff]
    %v118 = vld [vmem:[#allocation2 + $0x238] sm:$0xff]
    %v119 = vld [vmem:[#allocation2 + $0x240] sm:$0xff]
    %v120 = vld [vmem:[#allocation2 + $0x248] sm:$0xff]
    %v121 = vld [vmem:[#allocation2 + $0x250] sm:$0xff]
    %v122 = vld [vmem:[#allocation2 + $0x258] sm:$0xff]
    %v123 = vld [vmem:[#allocation2 + $0x260] sm:$0xff]
    %v124 = vld [vmem:[#allocation2 + $0x268] sm:$0xff]
    %v125 = vld [vmem:[#allocation2 + $0x270] sm:$0xff]
    %v126 = vld [vmem:[#allocation2 + $0x278] sm:$0xff]
    %v127 = vld [vmem:[#allocation2 + $0x280] sm:$0xff]
    %v128 = vld [vmem:[#allocation2 + $0x288] sm:$0xff]
    %v129 = vld [vmem:[#allocation2 + $0x290] sm:$0xff]
    %v130 = vld [vmem:[#allocation2 + $0x298] sm:$0xff]
    %v131 = vld [vmem:[#allocation2 + $0x2a0] sm:$0xff]
    %v132 = vld [vmem:[#allocation2 + $0x2a8] sm:$0xff]
    %v133 = vld [vmem:[#allocation2 + $0x2b0] sm:$0xff]
    %v134 = vld [vmem:[#allocation2 + $0x2b8] sm:$0xff]
    %v135 = vld [vmem:[#allocation2 + $0x2c0] sm:$0xff]
    %v136 = vld [vmem:[#allocation2 + $0x2c8] sm:$0xff]
    %v137 = vld [vmem:[#allocation2 + $0x2d0] sm:$0xff]
    %v138 = vld [vmem:[#allocation2 + $0x2d8] sm:$0xff]
    %v139 = vld [vmem:[#allocation2 + $0x2e0] sm:$0xff]
    %v140 = vld [vmem:[#allocation2 + $0x2e8] sm:$0xff]
    %v141 = vld [vmem:[#allocation2 + $0x2f0] sm:$0xff]
    %v142 = vld [vmem:[#allocation2 + $0x2f8] sm:$0xff]
    %v143 = vld [vmem:[#allocation2 + $0x300] sm:$0xff]
    %v144 = vld [vmem:[#allocation2 + $0x308] sm:$0xff]
    %v145 = vld [vmem:[#allocation2 + $0x310] sm:$0xff]
    %v146 = vld [vmem:[#allocation2 + $0x318] sm:$0xff]
    %v147 = vld [vmem:[#allocation2 + $0x320] sm:$0xff]
    %v148 = vld [vmem:[#allocation2 + $0x328] sm:$0xff]
    %v149 = vld [vmem:[#allocation2 + $0x330] sm:$0xff]
    %v150 = vld [vmem:[#allocation2 + $0x338] sm:$0xff]
    %v151 = vld [vmem:[#allocation2 + $0x340] sm:$0xff]
    %v152 = vld [vmem:[#allocation2 + $0x348] sm:$0xff]
    %v153 = vld [vmem:[#allocation2 + $0x350] sm:$0xff]
    %v154 = vld [vmem:[#allocation2 + $0x358] sm:$0xff]
    %v155 = vld [vmem:[#allocation2 + $0x360] sm:$0xff]
    %v156 = vld [vmem:[#allocation2 + $0x368] sm:$0xff]
    %v157 = vld [vmem:[#allocation2 + $0x370] sm:$0xff]
    %v158 = vld [vmem:[#allocation2 + $0x378] sm:$0xff]
    %v159 = vld [vmem:[#allocation2 + $0x380] sm:$0xff]
    %v160 = vld [vmem:[#allocation2 + $0x388] sm:$0xff]
    %v161 = vld [vmem:[#allocation2 + $0x390] sm:$0xff]
    %v162 = vld [vmem:[#allocation2 + $0x398] sm:$0xff]
    %v163 = vld [vmem:[#allocation2 + $0x3a0] sm:$0xff]
    %v164 = vld [vmem:[#allocation2 + $0x3a8] sm:$0xff]
    %v165 = vld [vmem:[#allocation2 + $0x3b0] sm:$0xff]
    %v166 = vld [vmem:[#allocation2 + $0x3b8] sm:$0xff]
    %v167 = vld [vmem:[#allocation2 + $0x3c0] sm:$0xff]
    %v168 = vld [vmem:[#allocation2 + $0x3c8] sm:$0xff]
    %v169 = vld [vmem:[#allocation2 + $0x3d0] sm:$0xff]
    %v170 = vld [vmem:[#allocation2 + $0x3d8] sm:$0xff]
    %v171 = vld [vmem:[#allocation2 + $0x3e0] sm:$0xff]
    %v172 = vld [vmem:[#allocation2 + $0x3e8] sm:$0xff]
    %v173 = vld [vmem:[#allocation2 + $0x3f0] sm:$0xff]
    %v174 = vld [vmem:[#allocation2 + $0x3f8] sm:$0xff]
    %v175 = vld [vmem:[#allocation2 + $0x400] sm:$0xff]
    %v176 = vld [vmem:[#allocation2 + $0x408] sm:$0xff]
    %v177 = vld [vmem:[#allocation2 + $0x410] sm:$0xff]
    %v178 = vld [vmem:[#allocation2 + $0x418] sm:$0xff]
    %v179 = vld [vmem:[#allocation2 + $0x420] sm:$0xff]
    %v180 = vld [vmem:[#allocation2 + $0x428] sm:$0xff]
    %v181 = vld [vmem:[#allocation2 + $0x430] sm:$0xff]
    %v182 = vld [vmem:[#allocation2 + $0x438] sm:$0xff]
    %v183 = vld [vmem:[#allocation2 + $0x440] sm:$0xff]
    %v184 = vld [vmem:[#allocation2 + $0x448] sm:$0xff]
    %v185 = vld [vmem:[#allocation2 + $0x450] sm:$0xff]
    %v186 = vld [vmem:[#allocation2 + $0x458] sm:$0xff]
    %v187 = vld [vmem:[#allocation2 + $0x460] sm:$0xff]
    %v188 = vld [vmem:[#allocation2 + $0x468] sm:$0xff]
    %v189 = vld [vmem:[#allocation2 + $0x470] sm:$0xff]
    %v190 = vld [vmem:[#allocation2 + $0x478] sm:$0xff]
    %v191 = vld [vmem:[#allocation2 + $0x480] sm:$0xff]
    %v192 = vld [vmem:[#allocation2 + $0x488] sm:$0xff]
    %v193 = vld [vmem:[#allocation2 + $0x490] sm:$0xff]
    %v194 = vld [vmem:[#allocation2 + $0x498] sm:$0xff]
    %v195 = vld [vmem:[#allocation2 + $0x4a0] sm:$0xff]
    %v196 = vld [vmem:[#allocation2 + $0x4a8] sm:$0xff]
    %v197 = vld [vmem:[#allocation2 + $0x4b0] sm:$0xff]
    %v198 = vld [vmem:[#allocation2 + $0x4b8] sm:$0xff]
    %v199 = vld [vmem:[#allocation2 + $0x4c0] sm:$0xff]
    %v200 = vld [vmem:[#allocation2 + $0x4c8] sm:$0xff]
    %v201 = vld [vmem:[#allocation2 + $0x4d0] sm:$0xff]
    %v202 = vld [vmem:[#allocation2 + $0x4d8] sm:$0xff]
    %v203 = vld [vmem:[#allocation2 + $0x4e0] sm:$0xff]
    %v204 = vld [vmem:[#allocation2 + $0x4e8] sm:$0xff]
    %v205 = vld [vmem:[#allocation2 + $0x4f0] sm:$0xff]
    %v206 = vld [vmem:[#allocation2 + $0x4f8] sm:$0xff]
    %v207 = vld [vmem:[#allocation2 + $0x500] sm:$0xff]
    %v208 = vld [vmem:[#allocation2 + $0x508] sm:$0xff]
    %v209 = vld [vmem:[#allocation2 + $0x510] sm:$0xff]
    %v210 = vld [vmem:[#allocation2 + $0x518] sm:$0xff]
    %v211 = vld [vmem:[#allocation2 + $0x520] sm:$0xff]
    %v212 = vld [vmem:[#allocation2 + $0x528] sm:$0xff]
    %v213 = vld [vmem:[#allocation2 + $0x530] sm:$0xff]
    %v214 = vld [vmem:[#allocation2 + $0x538] sm:$0xff]
    %v215 = vld [vmem:[#allocation2 + $0x540] sm:$0xff]
    %v216 = vld [vmem:[#allocation2 + $0x548] sm:$0xff]
    %v217 = vld [vmem:[#allocation2 + $0x550] sm:$0xff]
    %v218 = vld [vmem:[#allocation2 + $0x558] sm:$0xff]
    %v219 = vld [vmem:[#allocation2 + $0x560] sm:$0xff]
    %v220 = vld [vmem:[#allocation2 + $0x568] sm:$0xff]
    %v221 = vld [vmem:[#allocation2 + $0x570] sm:$0xff]
    %v222 = vld [vmem:[#allocation2 + $0x578] sm:$0xff]
    %v223 = vld [vmem:[#allocation2 + $0x580] sm:$0xff]
    %v224 = vld [vmem:[#allocation2 + $0x588] sm:$0xff]
    %v225 = vld [vmem:[#allocation2 + $0x590] sm:$0xff]
    %v226 = vld [vmem:[#allocation2 + $0x598] sm:$0xff]
    %v227 = vld [vmem:[#allocation2 + $0x5a0] sm:$0xff]
    %v228 = vld [vmem:[#allocation2 + $0x5a8] sm:$0xff]
    %v229 = vld [vmem:[#allocation2 + $0x5b0] sm:$0xff]
    %v230 = vld [vmem:[#allocation2 + $0x5b8] sm:$0xff]
    %v231 = vld [vmem:[#allocation2 + $0x5c0] sm:$0xff]
    %v232 = vld [vmem:[#allocation2 + $0x5c8] sm:$0xff]
    %v233 = vld [vmem:[#allocation2 + $0x5d0] sm:$0xff]
    %v234 = vld [vmem:[#allocation2 + $0x5d8] sm:$0xff]
    %v235 = vld [vmem:[#allocation2 + $0x5e0] sm:$0xff]
    %v236 = vld [vmem:[#allocation2 + $0x5e8] sm:$0xff]
    %v237 = vld [vmem:[#allocation2 + $0x5f0] sm:$0xff]
    %v238 = vld [vmem:[#allocation2 + $0x5f8] sm:$0xff]
    %v239 = vld [vmem:[#allocation2 + $0x600] sm:$0xff]
    %v240 = vld [vmem:[#allocation2 + $0x608] sm:$0xff]
    %v241 = vld [vmem:[#allocation2 + $0x610] sm:$0xff]
    %v242 = vld [vmem:[#allocation2 + $0x618] sm:$0xff]
    %v243 = vld [vmem:[%s2] sm:$0x3]
    %v245 = vlaneseq
    %v246 = vshrl.u32 %v245, 7
    %v247 = vsub.s32 0, %v246
    %v248 = vrot.slane %v243, %v247
    %v249 = vlaneseq
    %v250 = vshrl.u32 %v249, 7
    %v251 = vsub.s32 1, %v250
    %v252 = vrot.slane %v243, %v251
    %vm255 = vcmask 130048
    %v257 = vsel %vm255, %v46, 0
    %259 = vmatprep.subr.mxu0 %v48
    %260 = vmatpush1.msra.mxu0 %v47
    %261 = vmatprep.subr.mxu0 %v50
    %262 = vmatpush1.msra.mxu0 %v49
    %263 = vmatprep.subr.mxu0 %v52
    %264 = vmatpush1.msra.mxu0 %v51
    %265 = vmatprep.subr.mxu0 %v54
    %266 = vmatpush1.msra.mxu0 %v53
    %267 = vmatprep.subr.mxu0 %v56
    %268 = vmatpush1.msra.mxu0 %v55
    %269 = vmatprep.subr.mxu0 %v58
    %270 = vmatpush1.msra.mxu0 %v57
    %271 = vmatprep.subr.mxu0 %v60
    %272 = vmatpush1.msra.mxu0 %v59
    %273 = vmatprep.subr.mxu0 %v62
    %274 = vmatpush1.msra.mxu0 %v61
    %275 = vmatprep.subr.mxu0 %v64
    %276 = vmatpush1.msra.mxu0 %v63
    %277 = vmatprep.subr.mxu0 %v66
    %278 = vmatpush1.msra.mxu0 %v65
    %279 = vmatprep.subr.mxu0 %v68
    %280 = vmatpush1.msra.mxu0 %v67
    %281 = vmatprep.subr.mxu0 %v70
    %282 = vmatpush1.msra.mxu0 %v69
    %283 = vmatprep.subr.mxu0 %v72
    %284 = vmatpush1.msra.mxu0 %v71
    %285 = vmatprep.subr.mxu0 %v74
    %286 = vmatpush1.msra.mxu0 %v73
    %287 = vmatprep.subr.mxu0 %v76
    %288 = vmatpush1.msra.mxu0 %v75
    %289 = vmatprep.subr.mxu0 %v78
    %290 = vmatpush1.msra.mxu0 %v77
    %291 = vmatprep.subr.mxu0 %v80
    %292 = vmatpush1.msra.mxu0 %v79
    %293 = vmatprep.subr.mxu0 %v82
    %294 = vmatpush1.msra.mxu0 %v81
    %295 = vmatprep.subr.mxu0 %v84
    %296 = vmatpush1.msra.mxu0 %v83
    %297 = vmatprep.subr.mxu0 %v86
    %298 = vmatpush1.msra.mxu0 %v85
    %299 = vmatprep.subr.mxu0 %v88
    %300 = vmatpush1.msra.mxu0 %v87
    %301 = vmatprep.subr.mxu0 %v90
    %302 = vmatpush1.msra.mxu0 %v89
    %303 = vmatprep.subr.mxu0 %v92
    %304 = vmatpush1.msra.mxu0 %v91
    %305 = vmatprep.subr.mxu0 %v94
    %306 = vmatpush1.msra.mxu0 %v93
    %307 = vmatprep.subr.mxu0 %v96
    %308 = vmatpush1.msra.mxu0 %v95
    %309 = vmatprep.subr.mxu0 %v98
    %310 = vmatpush1.msra.mxu0 %v97
    %311 = vmatprep.subr.mxu0 %v100
    %312 = vmatpush1.msra.mxu0 %v99
    %313 = vmatprep.subr.mxu0 %v102
    %314 = vmatpush1.msra.mxu0 %v101
    %315 = vmatprep.subr.mxu0 %v104
    %316 = vmatpush1.msra.mxu0 %v103
    %317 = vmatprep.subr.mxu0 %v106
    %318 = vmatpush1.msra.mxu0 %v105
    %319 = vmatprep.subr.mxu0 %v108
    %320 = vmatpush1.msra.mxu0 %v107
    %321 = vmatprep.subr.mxu0 %v110
    %322 = vmatpush1.msra.mxu0 %v109
    %323 = vmatprep.mubr.f32.mxu0 %v41
    %324 = vmatmul.mubr.f32.gmra.mrb[0].mxu0 %v40
    %v325 = vpop.f32.mrb[0].mxu0
    %v326 = vadd.f32 %v248, %v325
    %v327 = vpop.f32.mrb[0].mxu0
    %v328 = vadd.f32 %v252, %v327
    %329 = vdwg.mxu0
    %330 = vmatprep.subr.mxu0 %v112
    %331 = vmatpush1.msra.mxu0 %v111
    %332 = vmatprep.subr.mxu0 %v114
    %333 = vmatpush1.msra.mxu0 %v113
    %334 = vmatprep.subr.mxu0 %v116
    %335 = vmatpush1.msra.mxu0 %v115
    %336 = vmatprep.subr.mxu0 %v118
    %337 = vmatpush1.msra.mxu0 %v117
    %338 = vmatprep.subr.mxu0 %v120
    %339 = vmatpush1.msra.mxu0 %v119
    %340 = vmatprep.subr.mxu0 %v122
    %341 = vmatpush1.msra.mxu0 %v121
    %342 = vmatprep.subr.mxu0 %v124
    %343 = vmatpush1.msra.mxu0 %v123
    %344 = vmatprep.subr.mxu0 %v126
    %345 = vmatpush1.msra.mxu0 %v125
    %346 = vmatprep.subr.mxu0 %v128
    %347 = vmatpush1.msra.mxu0 %v127
    %348 = vmatprep.subr.mxu0 %v130
    %349 = vmatpush1.msra.mxu0 %v129
    %350 = vmatprep.subr.mxu0 %v132
    %351 = vmatpush1.msra.mxu0 %v131
    %352 = vmatprep.subr.mxu0 %v134
    %353 = vmatpush1.msra.mxu0 %v133
    %354 = vmatprep.subr.mxu0 %v136
    %355 = vmatpush1.msra.mxu0 %v135
    %356 = vmatprep.subr.mxu0 %v138
    %357 = vmatpush1.msra.mxu0 %v137
    %358 = vmatprep.subr.mxu0 %v140
    %359 = vmatpush1.msra.mxu0 %v139
    %360 = vmatprep.subr.mxu0 %v142
    %361 = vmatpush1.msra.mxu0 %v141
    %362 = vmatprep.subr.mxu0 %v144
    %363 = vmatpush1.msra.mxu0 %v143
    %364 = vmatprep.subr.mxu0 %v146
    %365 = vmatpush1.msra.mxu0 %v145
    %366 = vmatprep.subr.mxu0 %v148
    %367 = vmatpush1.msra.mxu0 %v147
    %368 = vmatprep.subr.mxu0 %v150
    %369 = vmatpush1.msra.mxu0 %v149
    %370 = vmatprep.subr.mxu0 %v152
    %371 = vmatpush1.msra.mxu0 %v151
    %372 = vmatprep.subr.mxu0 %v154
    %373 = vmatpush1.msra.mxu0 %v153
    %374 = vmatprep.subr.mxu0 %v156
    %375 = vmatpush1.msra.mxu0 %v155
    %376 = vmatprep.subr.mxu0 %v158
    %377 = vmatpush1.msra.mxu0 %v157
    %378 = vmatprep.subr.mxu0 %v160
    %379 = vmatpush1.msra.mxu0 %v159
    %380 = vmatprep.subr.mxu0 %v162
    %381 = vmatpush1.msra.mxu0 %v161
    %382 = vmatprep.subr.mxu0 %v164
    %383 = vmatpush1.msra.mxu0 %v163
    %384 = vmatprep.subr.mxu0 %v166
    %385 = vmatpush1.msra.mxu0 %v165
    %386 = vmatprep.subr.mxu0 %v168
    %387 = vmatpush1.msra.mxu0 %v167
    %388 = vmatprep.subr.mxu0 %v170
    %389 = vmatpush1.msra.mxu0 %v169
    %390 = vmatprep.subr.mxu0 %v172
    %391 = vmatpush1.msra.mxu0 %v171
    %392 = vmatprep.subr.mxu0 %v174
    %393 = vmatpush1.msra.mxu0 %v173
    %394 = vmatprep.mubr.f32.mxu0 %v43
    %395 = vmatmul.mubr.f32.gmra.mrb[0].mxu0 %v42
    %v396 = vpop.f32.mrb[0].mxu0
    %v397 = vadd.f32 %v326, %v396
    %v398 = vpop.f32.mrb[0].mxu0
    %v399 = vadd.f32 %v328, %v398
    %400 = vdwg.mxu0
    %401 = vmatprep.subr.mxu0 %v176
    %402 = vmatpush1.msra.mxu0 %v175
    %403 = vmatprep.subr.mxu0 %v178
    %404 = vmatpush1.msra.mxu0 %v177
    %405 = vmatprep.subr.mxu0 %v180
    %406 = vmatpush1.msra.mxu0 %v179
    %407 = vmatprep.subr.mxu0 %v182
    %408 = vmatpush1.msra.mxu0 %v181
    %409 = vmatprep.subr.mxu0 %v184
    %410 = vmatpush1.msra.mxu0 %v183
    %411 = vmatprep.subr.mxu0 %v186
    %412 = vmatpush1.msra.mxu0 %v185
    %413 = vmatprep.subr.mxu0 %v188
    %414 = vmatpush1.msra.mxu0 %v187
    %415 = vmatprep.subr.mxu0 %v190
    %416 = vmatpush1.msra.mxu0 %v189
    %417 = vmatprep.subr.mxu0 %v192
    %418 = vmatpush1.msra.mxu0 %v191
    %419 = vmatprep.subr.mxu0 %v194
    %420 = vmatpush1.msra.mxu0 %v193
    %421 = vmatprep.subr.mxu0 %v196
    %422 = vmatpush1.msra.mxu0 %v195
    %423 = vmatprep.subr.mxu0 %v198
    %424 = vmatpush1.msra.mxu0 %v197
    %425 = vmatprep.subr.mxu0 %v200
    %426 = vmatpush1.msra.mxu0 %v199
    %427 = vmatprep.subr.mxu0 %v202
    %428 = vmatpush1.msra.mxu0 %v201
    %429 = vmatprep.subr.mxu0 %v204
    %430 = vmatpush1.msra.mxu0 %v203
    %431 = vmatprep.subr.mxu0 %v206
    %432 = vmatpush1.msra.mxu0 %v205
    %433 = vmatprep.subr.mxu0 %v208
    %434 = vmatpush1.msra.mxu0 %v207
    %435 = vmatprep.subr.mxu0 %v210
    %436 = vmatpush1.msra.mxu0 %v209
    %437 = vmatprep.subr.mxu0 %v212
    %438 = vmatpush1.msra.mxu0 %v211
    %439 = vmatprep.subr.mxu0 %v214
    %440 = vmatpush1.msra.mxu0 %v213
    %441 = vmatprep.subr.mxu0 %v216
    %442 = vmatpush1.msra.mxu0 %v215
    %443 = vmatprep.subr.mxu0 %v218
    %444 = vmatpush1.msra.mxu0 %v217
    %445 = vmatprep.subr.mxu0 %v220
    %446 = vmatpush1.msra.mxu0 %v219
    %447 = vmatprep.subr.mxu0 %v222
    %448 = vmatpush1.msra.mxu0 %v221
    %449 = vmatprep.subr.mxu0 %v224
    %450 = vmatpush1.msra.mxu0 %v223
    %451 = vmatprep.subr.mxu0 %v226
    %452 = vmatpush1.msra.mxu0 %v225
    %453 = vmatprep.subr.mxu0 %v228
    %454 = vmatpush1.msra.mxu0 %v227
    %455 = vmatprep.subr.mxu0 %v230
    %456 = vmatpush1.msra.mxu0 %v229
    %457 = vmatprep.subr.mxu0 %v232
    %458 = vmatpush1.msra.mxu0 %v231
    %459 = vmatprep.subr.mxu0 %v234
    %460 = vmatpush1.msra.mxu0 %v233
    %461 = vmatprep.subr.mxu0 %v236
    %462 = vmatpush1.msra.mxu0 %v235
    %463 = vmatprep.subr.mxu0 %v238
    %464 = vmatpush1.msra.mxu0 %v237
    %465 = vmatprep.mubr.f32.mxu0 %v45
    %466 = vmatmul.mubr.f32.gmra.mrb[0].mxu0 %v44
    %v467 = vpop.f32.mrb[0].mxu0
    %v468 = vadd.f32 %v397, %v467
    %v469 = vpop.f32.mrb[0].mxu0
    %v470 = vadd.f32 %v399, %v469
    %471 = vdwg.mxu0
    %472 = vmatprep.subr.mxu0 %v240
    %473 = vmatpush1.msra.mxu0 %v239
    %474 = vmatprep.subr.mxu0 %v242
    %475 = vmatpush1.msra.mxu0 %v241
    %476 = vmatprep.subr.mxu0 0.0
    %477 = vmatpush1.msra.mxu0 0.0
    %478 = vmatprep.subr.mxu0 0.0
    %479 = vmatpush1.msra.mxu0 0.0
    %480 = vmatprep.subr.mxu0 0.0
    %481 = vmatpush1.msra.mxu0 0.0
    %482 = vmatprep.subr.mxu0 0.0
    %483 = vmatpush1.msra.mxu0 0.0
    %484 = vmatprep.subr.mxu0 0.0
    %485 = vmatpush1.msra.mxu0 0.0
    %486 = vmatprep.subr.mxu0 0.0
    %487 = vmatpush1.msra.mxu0 0.0
    %488 = vmatprep.subr.mxu0 0.0
    %489 = vmatpush1.msra.mxu0 0.0
    %490 = vmatprep.subr.mxu0 0.0
    %491 = vmatpush1.msra.mxu0 0.0
    %492 = vmatprep.subr.mxu0 0.0
    %493 = vmatpush1.msra.mxu0 0.0
    %494 = vmatprep.subr.mxu0 0.0
    %495 = vmatpush1.msra.mxu0 0.0
    %496 = vmatprep.subr.mxu0 0.0
    %497 = vmatpush1.msra.mxu0 0.0
    %498 = vmatprep.subr.mxu0 0.0
    %499 = vmatpush1.msra.mxu0 0.0
    %500 = vmatprep.subr.mxu0 0.0
    %501 = vmatpush1.msra.mxu0 0.0
    %502 = vmatprep.subr.mxu0 0.0
    %503 = vmatpush1.msra.mxu0 0.0
    %504 = vmatprep.subr.mxu0 0.0
    %505 = vmatpush1.msra.mxu0 0.0
    %506 = vmatprep.subr.mxu0 0.0
    %507 = vmatpush1.msra.mxu0 0.0
    %508 = vmatprep.subr.mxu0 0.0
    %509 = vmatpush1.msra.mxu0 0.0
    %510 = vmatprep.subr.mxu0 0.0
    %511 = vmatpush1.msra.mxu0 0.0
    %512 = vmatprep.subr.mxu0 0.0
    %513 = vmatpush1.msra.mxu0 0.0
    %514 = vmatprep.subr.mxu0 0.0
    %515 = vmatpush1.msra.mxu0 0.0
    %516 = vmatprep.subr.mxu0 0.0
    %517 = vmatpush1.msra.mxu0 0.0
    %518 = vmatprep.subr.mxu0 0.0
    %519 = vmatpush1.msra.mxu0 0.0
    %520 = vmatprep.subr.mxu0 0.0
    %521 = vmatpush1.msra.mxu0 0.0
    %522 = vmatprep.subr.mxu0 0.0
    %523 = vmatpush1.msra.mxu0 0.0
    %524 = vmatprep.subr.mxu0 0.0
    %525 = vmatpush1.msra.mxu0 0.0
    %526 = vmatprep.subr.mxu0 0.0
    %527 = vmatpush1.msra.mxu0 0.0
    %528 = vmatprep.subr.mxu0 0.0
    %529 = vmatpush1.msra.mxu0 0.0
    %530 = vmatprep.subr.mxu0 0.0
    %531 = vmatpush1.msra.mxu0 0.0
    %532 = vmatprep.subr.mxu0 0.0
    %533 = vmatpush1.msra.mxu0 0.0
    %534 = vmatprep.subr.mxu0 0.0
    %535 = vmatpush1.msra.mxu0 0.0
    %536 = vmatprep.mubr.f32.mxu0 0.0
    %537 = vmatmul.mubr.f32.gmra.mrb[0].mxu0 %v257
    %v538 = vpop.f32.mrb[0].mxu0
    %v539 = vadd.f32 %v468, %v538
    %v540 = vpop.f32.mrb[0].mxu0
    %v541 = vadd.f32 %v470, %v540
    %542 = vdwg.mxu0
    %vm543 = vcmp.ge.f32.partialorder %v539, 0.0
    %vm544 = vcmp.ge.f32.partialorder %v541, 0.0
    %v545 = vmul.f32 %v539, 0.2
    %v546 = vmul.f32 %v541, 0.2
    %v547 = vsel %vm543, %v539, %v545
    %v548 = vsel %vm544, %v541, %v546
    %v549 = vld [vmem:[%s3] sm:$0xff]
    %v550 = vld [vmem:[%s3 + $0x8] sm:$0xff]
    %v551 = vld [vmem:[%s3 + $0x10] sm:$0xff]
    %v552 = vld [vmem:[%s3 + $0x18] sm:$0xff]
    %v553 = vld [vmem:[%s3 + $0x20] sm:$0xff]
    %v554 = vld [vmem:[%s3 + $0x28] sm:$0xff]
    %v555 = vld [vmem:[%s3 + $0x30] sm:$0xff]
    %v556 = vld [vmem:[%s3 + $0x38] sm:$0xff]
    %v557 = vld [vmem:[%s3 + $0x40] sm:$0xff]
    %v558 = vld [vmem:[%s3 + $0x48] sm:$0xff]
    %v559 = vld [vmem:[%s3 + $0x50] sm:$0xff]
    %v560 = vld [vmem:[%s3 + $0x58] sm:$0xff]
    %v561 = vld [vmem:[%s3 + $0x60] sm:$0xff]
    %v562 = vld [vmem:[%s3 + $0x68] sm:$0xff]
    %v563 = vld [vmem:[%s3 + $0x70] sm:$0xff]
    %v564 = vld [vmem:[%s3 + $0x78] sm:$0xff]
    %v565 = vld [vmem:[%s3 + $0x80] sm:$0xff]
    %v566 = vld [vmem:[%s3 + $0x88] sm:$0xff]
    %v567 = vld [vmem:[%s3 + $0x90] sm:$0xff]
    %v568 = vld [vmem:[%s3 + $0x98] sm:$0xff]
    %v569 = vld [vmem:[%s3 + $0xa0] sm:$0xff]
    %v570 = vld [vmem:[%s3 + $0xa8] sm:$0xff]
    %v571 = vld [vmem:[%s3 + $0xb0] sm:$0xff]
    %v572 = vld [vmem:[%s3 + $0xb8] sm:$0xff]
    %v573 = vld [vmem:[%s3 + $0xc0] sm:$0xff]
    %v574 = vld [vmem:[%s3 + $0xc8] sm:$0xff]
    %v575 = vld [vmem:[%s3 + $0xd0] sm:$0xff]
    %v576 = vld [vmem:[%s3 + $0xd8] sm:$0xff]
    %v577 = vld [vmem:[%s3 + $0xe0] sm:$0xff]
    %v578 = vld [vmem:[%s3 + $0xe8] sm:$0xff]
    %v579 = vld [vmem:[%s3 + $0xf0] sm:$0xff]
    %v580 = vld [vmem:[%s3 + $0xf8] sm:$0xff]
    %v581 = vld [vmem:[%s3 + $0x100] sm:$0xff]
    %v582 = vld [vmem:[%s3 + $0x108] sm:$0xff]
    %v583 = vld [vmem:[%s3 + $0x110] sm:$0xff]
    %v584 = vld [vmem:[%s3 + $0x118] sm:$0xff]
    %v585 = vld [vmem:[%s3 + $0x120] sm:$0xff]
    %v586 = vld [vmem:[%s3 + $0x128] sm:$0xff]
    %v587 = vld [vmem:[%s3 + $0x130] sm:$0xff]
    %v588 = vld [vmem:[%s3 + $0x138] sm:$0xff]
    %v589 = vld [vmem:[%s3 + $0x140] sm:$0xff]
    %v590 = vld [vmem:[%s3 + $0x148] sm:$0xff]
    %v591 = vld [vmem:[%s3 + $0x150] sm:$0xff]
    %v592 = vld [vmem:[%s3 + $0x158] sm:$0xff]
    %v593 = vld [vmem:[%s3 + $0x160] sm:$0xff]
    %v594 = vld [vmem:[%s3 + $0x168] sm:$0xff]
    %v595 = vld [vmem:[%s3 + $0x170] sm:$0xff]
    %v596 = vld [vmem:[%s3 + $0x178] sm:$0xff]
    %v597 = vld [vmem:[%s3 + $0x180] sm:$0xff]
    %v598 = vld [vmem:[%s3 + $0x188] sm:$0xff]
    %v599 = vld [vmem:[%s3 + $0x190] sm:$0xff]
    %v600 = vld [vmem:[%s3 + $0x198] sm:$0xff]
    %v601 = vld [vmem:[%s3 + $0x1a0] sm:$0xff]
    %v602 = vld [vmem:[%s3 + $0x1a8] sm:$0xff]
    %v603 = vld [vmem:[%s3 + $0x1b0] sm:$0xff]
    %v604 = vld [vmem:[%s3 + $0x1b8] sm:$0xff]
    %v605 = vld [vmem:[%s3 + $0x1c0] sm:$0xff]
    %v606 = vld [vmem:[%s3 + $0x1c8] sm:$0xff]
    %v607 = vld [vmem:[%s3 + $0x1d0] sm:$0xff]
    %v608 = vld [vmem:[%s3 + $0x1d8] sm:$0xff]
    %v609 = vld [vmem:[%s3 + $0x1e0] sm:$0xff]
    %v610 = vld [vmem:[%s3 + $0x1e8] sm:$0xff]
    %v611 = vld [vmem:[%s3 + $0x1f0] sm:$0xff]
    %v612 = vld [vmem:[%s3 + $0x1f8] sm:$0xff]
    %v613 = vld [vmem:[%s4] sm:$0x3]
    %v615 = vlaneseq
    %v616 = vshrl.u32 %v615, 7
    %v617 = vsub.s32 0, %v616
    %v618 = vrot.slane %v613, %v617
    %v619 = vlaneseq
    %v620 = vshrl.u32 %v619, 7
    %v621 = vsub.s32 1, %v620
    %v622 = vrot.slane %v613, %v621
    %625 = vmatprep.subr.mxu0 %v550
    %626 = vmatpush1.msra.mxu0 %v549
    %627 = vmatprep.subr.mxu0 %v552
    %628 = vmatpush1.msra.mxu0 %v551
    %629 = vmatprep.subr.mxu0 %v554
    %630 = vmatpush1.msra.mxu0 %v553
    %631 = vmatprep.subr.mxu0 %v556
    %632 = vmatpush1.msra.mxu0 %v555
    %633 = vmatprep.subr.mxu0 %v558
    %634 = vmatpush1.msra.mxu0 %v557
    %635 = vmatprep.subr.mxu0 %v560
    %636 = vmatpush1.msra.mxu0 %v559
    %637 = vmatprep.subr.mxu0 %v562
    %638 = vmatpush1.msra.mxu0 %v561
    %639 = vmatprep.subr.mxu0 %v564
    %640 = vmatpush1.msra.mxu0 %v563
    %641 = vmatprep.subr.mxu0 %v566
    %642 = vmatpush1.msra.mxu0 %v565
    %643 = vmatprep.subr.mxu0 %v568
    %644 = vmatpush1.msra.mxu0 %v567
    %645 = vmatprep.subr.mxu0 %v570
    %646 = vmatpush1.msra.mxu0 %v569
    %647 = vmatprep.subr.mxu0 %v572
    %648 = vmatpush1.msra.mxu0 %v571
    %649 = vmatprep.subr.mxu0 %v574
    %650 = vmatpush1.msra.mxu0 %v573
    %651 = vmatprep.subr.mxu0 %v576
    %652 = vmatpush1.msra.mxu0 %v575
    %653 = vmatprep.subr.mxu0 %v578
    %654 = vmatpush1.msra.mxu0 %v577
    %655 = vmatprep.subr.mxu0 %v580
    %656 = vmatpush1.msra.mxu0 %v579
    %657 = vmatprep.subr.mxu0 %v582
    %658 = vmatpush1.msra.mxu0 %v581
    %659 = vmatprep.subr.mxu0 %v584
    %660 = vmatpush1.msra.mxu0 %v583
    %661 = vmatprep.subr.mxu0 %v586
    %662 = vmatpush1.msra.mxu0 %v585
    %663 = vmatprep.subr.mxu0 %v588
    %664 = vmatpush1.msra.mxu0 %v587
    %665 = vmatprep.subr.mxu0 %v590
    %666 = vmatpush1.msra.mxu0 %v589
    %667 = vmatprep.subr.mxu0 %v592
    %668 = vmatpush1.msra.mxu0 %v591
    %669 = vmatprep.subr.mxu0 %v594
    %670 = vmatpush1.msra.mxu0 %v593
    %671 = vmatprep.subr.mxu0 %v596
    %672 = vmatpush1.msra.mxu0 %v595
    %673 = vmatprep.subr.mxu0 %v598
    %674 = vmatpush1.msra.mxu0 %v597
    %675 = vmatprep.subr.mxu0 %v600
    %676 = vmatpush1.msra.mxu0 %v599
    %677 = vmatprep.subr.mxu0 %v602
    %678 = vmatpush1.msra.mxu0 %v601
    %679 = vmatprep.subr.mxu0 %v604
    %680 = vmatpush1.msra.mxu0 %v603
    %681 = vmatprep.subr.mxu0 %v606
    %682 = vmatpush1.msra.mxu0 %v605
    %683 = vmatprep.subr.mxu0 %v608
    %684 = vmatpush1.msra.mxu0 %v607
    %685 = vmatprep.subr.mxu0 %v610
    %686 = vmatpush1.msra.mxu0 %v609
    %687 = vmatprep.subr.mxu0 %v612
    %688 = vmatpush1.msra.mxu0 %v611
    %689 = vmatprep.mubr.f32.mxu0 %v548
    %690 = vmatmul.mubr.f32.gmra.mrb[0].mxu0 %v547
    %v691 = vpop.f32.mrb[0].mxu0
    %v692 = vadd.f32 %v618, %v691
    %v693 = vpop.f32.mrb[0].mxu0
    %v694 = vadd.f32 %v622, %v693
    %695 = vdwg.mxu0
    %vm696 = vcmp.ge.f32.partialorder %v692, 0.0
    %vm697 = vcmp.ge.f32.partialorder %v694, 0.0
    %v698 = vmul.f32 %v692, 0.2
    %v699 = vmul.f32 %v694, 0.2
    %v700 = vsel %vm696, %v692, %v698
    %v701 = vsel %vm697, %v694, %v699
    %v702 = vld [vmem:[%s5] sm:$0xff]
    %v703 = vld [vmem:[%s5 + $0x8] sm:$0xff]
    %v704 = vld [vmem:[%s5 + $0x10] sm:$0xff]
    %v705 = vld [vmem:[%s5 + $0x18] sm:$0xff]
    %v706 = vld [vmem:[%s5 + $0x20] sm:$0xff]
    %v707 = vld [vmem:[%s5 + $0x28] sm:$0xff]
    %v708 = vld [vmem:[%s5 + $0x30] sm:$0xff]
    %v709 = vld [vmem:[%s5 + $0x38] sm:$0xff]
    %v710 = vld [vmem:[%s5 + $0x40] sm:$0xff]
    %v711 = vld [vmem:[%s5 + $0x48] sm:$0xff]
    %v712 = vld [vmem:[%s5 + $0x50] sm:$0xff]
    %v713 = vld [vmem:[%s5 + $0x58] sm:$0xff]
    %v714 = vld [vmem:[%s5 + $0x60] sm:$0xff]
    %v715 = vld [vmem:[%s5 + $0x68] sm:$0xff]
    %v716 = vld [vmem:[%s5 + $0x70] sm:$0xff]
    %v717 = vld [vmem:[%s5 + $0x78] sm:$0xff]
    %v718 = vld [vmem:[%s5 + $0x80] sm:$0xff]
    %v719 = vld [vmem:[%s5 + $0x88] sm:$0xff]
    %v720 = vld [vmem:[%s5 + $0x90] sm:$0xff]
    %v721 = vld [vmem:[%s5 + $0x98] sm:$0xff]
    %v722 = vld [vmem:[%s5 + $0xa0] sm:$0xff]
    %v723 = vld [vmem:[%s5 + $0xa8] sm:$0xff]
    %v724 = vld [vmem:[%s5 + $0xb0] sm:$0xff]
    %v725 = vld [vmem:[%s5 + $0xb8] sm:$0xff]
    %v726 = vld [vmem:[%s5 + $0xc0] sm:$0xff]
    %v727 = vld [vmem:[%s5 + $0xc8] sm:$0xff]
    %v728 = vld [vmem:[%s5 + $0xd0] sm:$0xff]
    %v729 = vld [vmem:[%s5 + $0xd8] sm:$0xff]
    %v730 = vld [vmem:[%s5 + $0xe0] sm:$0xff]
    %v731 = vld [vmem:[%s5 + $0xe8] sm:$0xff]
    %v732 = vld [vmem:[%s5 + $0xf0] sm:$0xff]
    %v733 = vld [vmem:[%s5 + $0xf8] sm:$0xff]
    %v734 = vld [vmem:[%s6] sm:$0x1]
    %v736 = vlaneseq
    %v737 = vshrl.u32 %v736, 7
    %v738 = vsub.s32 0, %v737
    %v739 = vrot.slane %v734, %v738
    %741 = vmatprep.subr.mxu0 0.0
    %742 = vmatpush1.msra.mxu0 %v702
    %743 = vmatprep.subr.mxu0 0.0
    %744 = vmatpush1.msra.mxu0 %v703
    %745 = vmatprep.subr.mxu0 0.0
    %746 = vmatpush1.msra.mxu0 %v704
    %747 = vmatprep.subr.mxu0 0.0
    %748 = vmatpush1.msra.mxu0 %v705
    %749 = vmatprep.subr.mxu0 0.0
    %750 = vmatpush1.msra.mxu0 %v706
    %751 = vmatprep.subr.mxu0 0.0
    %752 = vmatpush1.msra.mxu0 %v707
    %753 = vmatprep.subr.mxu0 0.0
    %754 = vmatpush1.msra.mxu0 %v708
    %755 = vmatprep.subr.mxu0 0.0
    %756 = vmatpush1.msra.mxu0 %v709
    %757 = vmatprep.subr.mxu0 0.0
    %758 = vmatpush1.msra.mxu0 %v710
    %759 = vmatprep.subr.mxu0 0.0
    %760 = vmatpush1.msra.mxu0 %v711
    %761 = vmatprep.subr.mxu0 0.0
    %762 = vmatpush1.msra.mxu0 %v712
    %763 = vmatprep.subr.mxu0 0.0
    %764 = vmatpush1.msra.mxu0 %v713
    %765 = vmatprep.subr.mxu0 0.0
    %766 = vmatpush1.msra.mxu0 %v714
    %767 = vmatprep.subr.mxu0 0.0
    %768 = vmatpush1.msra.mxu0 %v715
    %769 = vmatprep.subr.mxu0 0.0
    %770 = vmatpush1.msra.mxu0 %v716
    %771 = vmatprep.subr.mxu0 0.0
    %772 = vmatpush1.msra.mxu0 %v717
    %773 = vmatprep.subr.mxu0 0.0
    %774 = vmatpush1.msra.mxu0 %v718
    %775 = vmatprep.subr.mxu0 0.0
    %776 = vmatpush1.msra.mxu0 %v719
    %777 = vmatprep.subr.mxu0 0.0
    %778 = vmatpush1.msra.mxu0 %v720
    %779 = vmatprep.subr.mxu0 0.0
    %780 = vmatpush1.msra.mxu0 %v721
    %781 = vmatprep.subr.mxu0 0.0
    %782 = vmatpush1.msra.mxu0 %v722
    %783 = vmatprep.subr.mxu0 0.0
    %784 = vmatpush1.msra.mxu0 %v723
    %785 = vmatprep.subr.mxu0 0.0
    %786 = vmatpush1.msra.mxu0 %v724
    %787 = vmatprep.subr.mxu0 0.0
    %788 = vmatpush1.msra.mxu0 %v725
    %789 = vmatprep.subr.mxu0 0.0
    %790 = vmatpush1.msra.mxu0 %v726
    %791 = vmatprep.subr.mxu0 0.0
    %792 = vmatpush1.msra.mxu0 %v727
    %793 = vmatprep.subr.mxu0 0.0
    %794 = vmatpush1.msra.mxu0 %v728
    %795 = vmatprep.subr.mxu0 0.0
    %796 = vmatpush1.msra.mxu0 %v729
    %797 = vmatprep.subr.mxu0 0.0
    %798 = vmatpush1.msra.mxu0 %v730
    %799 = vmatprep.subr.mxu0 0.0
    %800 = vmatpush1.msra.mxu0 %v731
    %801 = vmatprep.subr.mxu0 0.0
    %802 = vmatpush1.msra.mxu0 %v732
    %803 = vmatprep.subr.mxu0 0.0
    %804 = vmatpush1.msra.mxu0 %v733
    %805 = vmatprep.mubr.f32.mxu0 %v701
    %806 = vmatmul.mubr.f32.gmra.mrb[0].mxu0 %v700
    %v807 = vpop.f32.mrb[0].mxu0
    %v808 = vadd.f32 %v739, %v807
    %v809 = vpop.f32.mrb[0].mxu0
    %810 = vdwg.mxu0
    %v811 = vsub.f32 0.0, %v808
    %v812 = vmul.f32 %v811, 1.442695
    %v813 = vpow.pop %v812
    %v814 = vadd.f32 %v813, 1.0
    %v815 = vrcp.pop %v814
    %v816 = vmul.f32 1.0, %v815
    %vm817 = vcmask 7168
    %818 = vst.msk [vmem:[%s7] sm:$0xff] %vm817, %v816
    // Predicated region
    $region34: #{discriminator_forward.1} parent=1 // pred_check
      _
    $region35: #{discriminator_forward.1} parent=1 // pred_check_branch
      %820 = sbr.rel (0) target = $region37
    $region36: #{discriminator_forward.1} parent=1 // pred_region
      _
    $region37: #{discriminator_forward.1} parent=1 // pred_fallthru
      _
    // Predicated region
    $region38: #{discriminator_forward.1} parent=1 // pred_check
      _
    $region39: #{discriminator_forward.1} parent=1 // pred_check_branch
      %822 = sbr.rel (0) target = $region41
    $region40: #{discriminator_forward.1} parent=1 // pred_region
      _
    $region41: #{discriminator_forward.1} parent=1 // pred_fallthru
      _
    %823 = vsyncpa [#allocation3], 1

</llo_original>
